<compile_context>
chip_gen: v7x
topology: tpu7x:2x2x1
jax: 0.10.0
libtpu: 0.0.40
codegen_flags: <defaults>
</compile_context>

<pallas_src>
import numpy as np
import jax
import jax.numpy as jnp
from jax import lax
from jax.experimental import pallas as pl
from jax.experimental.pallas import tpu as pltpu

# ---- static model config (small shapes consistent with the module) ----
OUT_CHANNELS = 32            # out_channels
STRIDE = 2                   # time stride of first conv & shortcut conv
CNN_DROPOUT = 0.1            # unused in eval mode
H1 = OUT_CHANNELS // 4       # hidden1 = 8
H2 = OUT_CHANNELS // 2       # hidden2 = 16
FIN = 13                     # feature dim (Conv1d in_channels=13 forces this)
HOUT1 = 7                    # conv1 output height: floor((13 + 2*6 - 13)/2) + 1
H1F = H1 * HOUT1             # flattened (channel, height) features after conv1 = 56
BN_EPS = 1e-5
LANE = 128                   # TPU lane width; final/conv3/skip widths padded to this

B = 2
T = 16
T1 = (T - 1) // STRIDE + 1   # time length after strided conv = 8
R = B * T1                   # stacked rows processed by the single kernel step = 16


# ------------------------------ in-kernel GELU (erf-based) ------------------------------
def _erf_approx(x):
    # Abramowitz & Stegun 7.1.26 rational approximation, |err| <= 1.5e-7 (well inside 1e-3
    # test tolerance; kept instead of tanh-GELU so accuracy needs no re-validation).
    a1, a2, a3, a4, a5 = 0.254829592, -0.284496736, 1.421413741, -1.453152027, 1.061405429
    p = 0.3275911
    sgn = jnp.where(x >= 0, 1.0, -1.0)
    ax = jnp.abs(x)
    t = 1.0 / (1.0 + p * ax)
    poly = ((((a5 * t + a4) * t + a3) * t + a2) * t + a1) * t
    return sgn * (1.0 - poly * jnp.exp(-ax * ax))


def _gelu(x):
    # nn.GELU() default (erf form): 0.5 * x * (1 + erf(x / sqrt(2)));  GELU(0) == 0 exactly.
    return 0.5 * x * (1.0 + _erf_approx(x * 0.7071067811865476))


# ------------------------------------ Pallas kernel ------------------------------------
def cnn_embed_kernel(lrow_ref,                    # (R, 1) int32 per-row valid length (MaskCNN)
                     x_ref,                       # (R, 3*FIN) im2col'd strided input frames
                     w1_ref,                      # (3*FIN, LANE + H1F) [skip(32)+pad | conv1(56)]
                     w2_ref,                      # (H1F, 3*H2) conv2 taps fused along N
                     w3_ref,                      # (H2, 3*LANE) conv3 taps fused along N (padded)
                     b_ref,                       # (8, LANE) folded BN biases: b1,b2,b3,bs
                     out_ref):                    # (R, LANE) lane-dense output
    t_loc = lax.broadcasted_iota(jnp.int32, (R, 1), 0) % T1  # time index within each sequence
    valid = t_loc < lrow_ref[...]                 # MaskCNN mask along time (post-BN per layer)
    has_prev = t_loc > 0                          # t-1 tap stays inside this sequence
    has_next = t_loc < (T1 - 1)                   # t+1 tap stays inside this sequence

    X = x_ref[...]                                # (R, 3*FIN)

    # --- Conv2d(1->H1, k=(13,3), stride=(2,STRIDE), pad=(6,1))  +  shortcut Conv1d, one matmul ---
    p1 = jnp.dot(X, w1_ref[...], preferred_element_type=jnp.float32)   # (R, LANE + H1F)
    sk = p1[:, :LANE] + b_ref[3:4, :]             # shortcut + BatchNorm1d bias; never masked
    y1 = p1[:, LANE:] + b_ref[0:1, :H1F]          # conv1 + BatchNorm2d bias (scale folded in W1)
    y1 = jnp.where(valid, y1, 0.0)                # MaskCNN; Dropout2d = identity (eval)
    y1 = _gelu(y1)

    # --- Conv2d(H1->H2, k=(6,3), stride=(2,1), pad=(0,1)): one fused matmul, shift the outputs ---
    p2 = jnp.dot(y1, w2_ref[...], preferred_element_type=jnp.float32)  # (R, 3*H2)
    y2 = p2[:, H2:2 * H2]
    y2 = y2 + jnp.where(has_prev, jnp.roll(p2[:, :H2], 1, axis=0), 0.0)
    y2 = y2 + jnp.where(has_next, jnp.roll(p2[:, 2 * H2:], -1, axis=0), 0.0)
    y2 = y2 + b_ref[1:2, :H2]
    y2 = jnp.where(valid, y2, 0.0)
    y2 = _gelu(y2)

    # --- Conv2d(H2->C, k=(1,3), pad=(0,1)): one fused matmul, output blocks padded to 128 lanes ---
    p3 = jnp.dot(y2, w3_ref[...], preferred_element_type=jnp.float32)  # (R, 3*LANE)
    y3 = p3[:, LANE:2 * LANE]
    y3 = y3 + jnp.where(has_prev, jnp.roll(p3[:, :LANE], 1, axis=0), 0.0)
    y3 = y3 + jnp.where(has_next, jnp.roll(p3[:, 2 * LANE:], -1, axis=0), 0.0)
    y3 = y3 + b_ref[2:3, :]
    y3 = jnp.where(valid, y3, 0.0)

    # skip-add + GELU; lanes >= OUT_CHANNELS are exactly 0, store is dense 128-lane
    out_ref[...] = _gelu(y3 + sk)


# ------------------------------------ host wrapper ------------------------------------
def cnn_embedding_skip(x, lx, packed):
    """x: (B, T, 13) float32, lx: (B,) int32 -> (out (B, T1, C), lx_out (B,) int32)."""
    xp = jnp.transpose(x, (0, 2, 1))                      # (B, 13, T)  (x.permute(0,2,1))
    xpad = jnp.pad(xp, ((0, 0), (0, 0), (1, 1)))          # zero time padding of 1
    idx = jnp.arange(T1) * STRIDE
    cols = [xpad[:, :, idx + kw] for kw in range(3)]      # each (B, 13, T1)
    x1 = jnp.transpose(jnp.concatenate(cols, axis=1), (0, 2, 1)).reshape(R, 3 * FIN)

    # MaskCNN length recurrence: only the first conv (strided along time) changes lengths.
    lx1 = ((lx.astype(jnp.int32) - 1) // STRIDE + 1).astype(jnp.int32)
    lrow = jnp.repeat(lx1, T1).reshape(R, 1)              # per stacked row valid length

    w1, w2, w3, bias = packed["w1"], packed["w2"], packed["w3"], packed["bias"]
    flops = 2 * R * (w1.shape[0] * w1.shape[1] + w2.shape[0] * w2.shape[1]
                     + w3.shape[0] * w3.shape[1])
    bytes_accessed = 4 * (lrow.size + x1.size + w1.size + w2.size + w3.size
                          + bias.size + R * LANE)
    vmem_spec = pl.BlockSpec(memory_space=pltpu.MemorySpace.VMEM)

    out = pl.pallas_call(
        cnn_embed_kernel,
        out_shape=jax.ShapeDtypeStruct((R, LANE), jnp.float32),
        in_specs=[vmem_spec] * 6,
        out_specs=vmem_spec,
        cost_estimate=pl.CostEstimate(flops=flops,
                                      transcendentals=R * (H1F + H2 + LANE),
                                      bytes_accessed=bytes_accessed),
    )(lrow, x1, w1, w2, w3, bias)

    return out[:, :OUT_CHANNELS].reshape(B, T1, OUT_CHANNELS), lx1


# --------------------------- deterministic parameter construction ---------------------------
def init_params(key):
    ks = jax.random.split(key, 8)
    w1 = jax.random.normal(ks[0], (H1, 1, 13, 3), jnp.float32) / np.sqrt(13 * 3)
    w2 = jax.random.normal(ks[1], (H2, H1, 6, 3), jnp.float32) / np.sqrt(H1 * 6 * 3)
    w3 = jax.random.normal(ks[2], (OUT_CHANNELS, H2, 1, 3), jnp.float32) / np.sqrt(H2 * 3)
    ws = jax.random.normal(ks[3], (OUT_CHANNELS, 13, 3), jnp.float32) / np.sqrt(13 * 3)

    def bn(k, n):
        k1, k2, k3, k4 = jax.random.split(k, 4)
        gamma = 1.0 + 0.1 * jax.random.normal(k1, (n,), jnp.float32)
        beta = 0.1 * jax.random.normal(k2, (n,), jnp.float32)
        mean = 0.1 * jax.random.normal(k3, (n,), jnp.float32)
        var = 0.5 + 0.5 * jnp.abs(jax.random.normal(k4, (n,), jnp.float32))
        return gamma, beta, mean, var

    return dict(w1=w1, w2=w2, w3=w3, ws=ws,
                bn1=bn(ks[4], H1), bn2=bn(ks[5], H2),
                bn3=bn(ks[6], OUT_CHANNELS), bns=bn(ks[7], OUT_CHANNELS))


def pack_params(p):
    """Pack conv weights into matmul-ready matrices; fold eval-mode BN scale into the weights."""
    w1 = np.asarray(p["w1"]); w2 = np.asarray(p["w2"])
    w3 = np.asarray(p["w3"]); ws = np.asarray(p["ws"])

    def bn_fold(bn):
        g, be, m, v = [np.asarray(a, np.float32) for a in bn]
        scale = g / np.sqrt(v + BN_EPS)
        bias = be - m * scale
        return scale.astype(np.float32), bias.astype(np.float32)

    s1, b1 = bn_fold(p["bn1"])
    s2, b2 = bn_fold(p["bn2"])
    s3, b3 = bn_fold(p["bn3"])
    ss, bs = bn_fold(p["bns"])

    # Conv1 im2col: out[c, h, t] = sum_{kh,kw} in[2h-6+kh, STRIDE*t-1+kw] * w1[c,0,kh,kw]
    wc1 = np.zeros((3 * FIN, H1F), np.float32)
    for c in range(H1):
        for h in range(HOUT1):
            base = 2 * h - 6
            for kh in range(13):
                f = base + kh
                if 0 <= f < FIN:
                    for kw in range(3):
                        wc1[kw * FIN + f, c * HOUT1 + h] = w1[c, 0, kh, kw]
    wc1 *= np.repeat(s1, HOUT1)[None, :]                   # fold BN2d(hidden1) scale

    # Shortcut Conv1d(13 -> C, k=3)
    wsm = np.zeros((3 * FIN, OUT_CHANNELS), np.float32)
    for kw in range(3):
        for f in range(FIN):
            for c in range(OUT_CHANNELS):
                wsm[kw * FIN + f, c] = ws[c, f, kw]
    wsm *= ss[None, :]                                     # fold BN1d scale

    # W1 = [shortcut(32) | zero pad to 128 | conv1(56)] so both kernel slices are vreg-aligned.
    W1 = np.zeros((3 * FIN, LANE + H1F), np.float32)
    W1[:, :OUT_CHANNELS] = wsm
    W1[:, LANE:] = wc1

    # Conv2 (single output height, uses input heights 0..5); taps fused along N: [kw0|kw1|kw2]
    W2 = np.zeros((H1F, 3 * H2), np.float32)
    for kw in range(3):
        for c2 in range(H2):
            for c1 in range(H1):
                for kh in range(6):
                    W2[c1 * HOUT1 + kh, kw * H2 + c2] = w2[c2, c1, kh, kw] * s2[c2]

    # Conv3 (1x3 over channels); each kw block zero-padded to 128 lanes for dense final layout.
    W3 = np.zeros((H2, 3 * LANE), np.float32)
    for kw in range(3):
        for c in range(OUT_CHANNELS):
            for c2 in range(H2):
                W3[c2, kw * LANE + c] = w3[c, c2, 0, kw] * s3[c]

    BIAS = np.zeros((8, LANE), np.float32)
    BIAS[0, :H1F] = np.repeat(b1, HOUT1)
    BIAS[1, :H2] = b2
    BIAS[2, :OUT_CHANNELS] = b3
    BIAS[3, :OUT_CHANNELS] = bs

    return dict(w1=jnp.asarray(W1), w2=jnp.asarray(W2), w3=jnp.asarray(W3),
                bias=jnp.asarray(BIAS))


# --------------------------- pure-JAX reference (PyTorch eval semantics) ---------------------------
def reference(x, lx, p):
    xp = jnp.transpose(x, (0, 2, 1))                 # (B, 13, T)
    xi = xp[:, None, :, :]                           # (B, 1, 13, T)  == x.permute(0,2,1).unsqueeze(1)
    dn2 = ('NCHW', 'OIHW', 'NCHW')
    lx1 = (lx.astype(jnp.int32) - 1) // STRIDE + 1

    def gelu_exact(v):
        return 0.5 * v * (1.0 + jax.scipy.special.erf(v * 0.7071067811865476))

    def mask_t(y, L):
        t = y.shape[-1]
        m = jnp.arange(t)[None, None, None, :] < L[:, None, None, None]
        return jnp.where(m, y, 0.0)

    def bn2d(y, bn):
        g, be, m, v = bn
        return (y - m[None, :, None, None]) / jnp.sqrt(v[None, :, None, None] + BN_EPS) \
            * g[None, :, None, None] + be[None, :, None, None]

    y = lax.conv_general_dilated(xi, p["w1"], (2, STRIDE), ((6, 6), (1, 1)), dimension_numbers=dn2)
    y = mask_t(y, lx1)
    y = mask_t(bn2d(y, p["bn1"]), lx1)
    y = gelu_exact(y)
    y = lax.conv_general_dilated(y, p["w2"], (2, 1), ((0, 0), (1, 1)), dimension_numbers=dn2)
    y = mask_t(y, lx1)
    y = mask_t(bn2d(y, p["bn2"]), lx1)
    y = gelu_exact(y)
    y = lax.conv_general_dilated(y, p["w3"], (1, 1), ((0, 0), (1, 1)), dimension_numbers=dn2)
    y = mask_t(y, lx1)
    y = mask_t(bn2d(y, p["bn3"]), lx1)
    conv_out = jnp.transpose(y, (0, 3, 1, 2)).reshape(x.shape[0], -1, OUT_CHANNELS)

    sk = lax.conv_general_dilated(xp, p["ws"], (STRIDE,), ((1, 1),),
                                  dimension_numbers=('NCH', 'OIH', 'NCH'))
    g, be, m, v = p["bns"]
    sk = (sk - m[None, :, None]) / jnp.sqrt(v[None, :, None] + BN_EPS) * g[None, :, None] + be[None, :, None]
    sk = jnp.transpose(sk, (0, 2, 1))
    return gelu_exact(conv_out + sk), lx1


if __name__ == "__main__":
    key = jax.random.PRNGKey(0)
    kx, kp = jax.random.split(key)
    x = jax.random.normal(kx, (B, T, FIN), jnp.float32)   # (batch, time, 13 features)
    lx = jnp.array([T, 12], jnp.int32)                    # actual sequence lengths

    raw = init_params(kp)
    packed = pack_params(raw)

    out, lx_out = cnn_embedding_skip(x, lx, packed)
    out = jax.block_until_ready(out)

    ref_out, ref_lx = reference(x, lx, raw)
    np.testing.assert_allclose(np.asarray(out), np.asarray(ref_out), rtol=1e-3, atol=1e-3)
    assert np.array_equal(np.asarray(lx_out), np.asarray(ref_lx))
    print("KERNEL_OK")
</pallas_src>

<mosaic_0001>
module attributes {stable_mosaic.version = 11 : i64} {
  func.func @cnn_embed_kernel(%arg0: memref<16x1xi32, #tpu.memory_space<vmem>>, %arg1: memref<16x39xf32, #tpu.memory_space<vmem>>, %arg2: memref<39x184xf32, #tpu.memory_space<vmem>>, %arg3: memref<56x48xf32, #tpu.memory_space<vmem>>, %arg4: memref<16x384xf32, #tpu.memory_space<vmem>>, %arg5: memref<8x128xf32, #tpu.memory_space<vmem>>, %arg6: memref<16x128xf32, #tpu.memory_space<vmem>>) attributes {dimension_semantics = [], scalar_prefetch = 0 : i64, scratch_operands = 0 : i64, tpu.core_type = #tpu.core_type<tc>} {
    %0 = tpu.iota {dimensions = array<i32: 0>} : vector<16x1xi32>
    %c8_i32 = arith.constant 8 : i32
    %c0_i32 = arith.constant 0 : i32
    %1 = arith.cmpi eq, %c8_i32, %c0_i32 : i32
    %c1_i32 = arith.constant 1 : i32
    %2 = arith.select %1, %c1_i32, %c8_i32 : i32
    %3 = vector.broadcast %2 : i32 to vector<16x1xi32>
    %4 = arith.remsi %0, %3 : vector<16x1xi32>
    %c0_i32_0 = arith.constant 0 : i32
    %5 = vector.broadcast %c0_i32_0 : i32 to vector<16x1xi32>
    %6 = arith.cmpi ne, %4, %5 : vector<16x1xi32>
    %c0_i32_1 = arith.constant 0 : i32
    %7 = vector.broadcast %c0_i32_1 : i32 to vector<16x1xi32>
    %8 = arith.cmpi slt, %4, %7 : vector<16x1xi32>
    %c0_i32_2 = arith.constant 0 : i32
    %9 = arith.cmpi slt, %2, %c0_i32_2 : i32
    %10 = vector.broadcast %9 : i1 to vector<16x1xi1>
    %11 = vector.broadcast %10 : vector<16x1xi1> to vector<16x1xi1>
    %12 = arith.xori %8, %11 : vector<16x1xi1>
    %13 = arith.andi %12, %6 : vector<16x1xi1>
    %14 = vector.broadcast %2 : i32 to vector<16x1xi32>
    %15 = arith.addi %4, %14 : vector<16x1xi32>
    %16 = arith.select %13, %15, %4 : vector<16x1xi1>, vector<16x1xi32>
    %c0 = arith.constant 0 : index
    %c0_3 = arith.constant 0 : index
    %17 = vector.load %arg0[%c0, %c0_3] : memref<16x1xi32, #tpu.memory_space<vmem>>, vector<16x1xi32>
    %18 = arith.cmpi slt, %16, %17 : vector<16x1xi32>
    %c0_i32_4 = arith.constant 0 : i32
    %19 = vector.broadcast %c0_i32_4 : i32 to vector<16x1xi32>
    %20 = arith.cmpi sgt, %16, %19 : vector<16x1xi32>
    %c7_i32 = arith.constant 7 : i32
    %21 = vector.broadcast %c7_i32 : i32 to vector<16x1xi32>
    %22 = arith.cmpi slt, %16, %21 : vector<16x1xi32>
    %c0_5 = arith.constant 0 : index
    %c0_6 = arith.constant 0 : index
    %23 = vector.load %arg1[%c0_5, %c0_6] : memref<16x39xf32, #tpu.memory_space<vmem>>, vector<16x39xf32>
    %c0_7 = arith.constant 0 : index
    %c0_8 = arith.constant 0 : index
    %24 = vector.load %arg2[%c0_7, %c0_8] : memref<39x184xf32, #tpu.memory_space<vmem>>, vector<39x184xf32>
    %cst = arith.constant dense<0.000000e+00> : vector<16x184xf32>
    %25 = tpu.matmul %23, %24, %cst {dimension_numbers = #tpu.dot_dimension_numbers<[1], [0], [0], [1], [0, 0, 1, 1], [], []>} : vector<16x39xf32>, vector<39x184xf32>, vector<16x184xf32> -> vector<16x184xf32>
    %26 = vector.extract_strided_slice %25 {offsets = [0, 0], sizes = [16, 128], strides = [1, 1]} : vector<16x184xf32> to vector<16x128xf32>
    %c3 = arith.constant 3 : index
    %c0_9 = arith.constant 0 : index
    %27 = vector.load %arg5[%c3, %c0_9] : memref<8x128xf32, #tpu.memory_space<vmem>>, vector<1x128xf32>
    %28 = vector.broadcast %27 : vector<1x128xf32> to vector<16x128xf32>
    %29 = arith.addf %26, %28 : vector<16x128xf32>
    %30 = vector.extract_strided_slice %25 {offsets = [0, 128], sizes = [16, 56], strides = [1, 1]} : vector<16x184xf32> to vector<16x56xf32>
    %c0_10 = arith.constant 0 : index
    %c0_11 = arith.constant 0 : index
    %31 = vector.load %arg5[%c0_10, %c0_11] : memref<8x128xf32, #tpu.memory_space<vmem>>, vector<1x56xf32>
    %32 = vector.broadcast %31 : vector<1x56xf32> to vector<16x56xf32>
    %33 = arith.addf %30, %32 : vector<16x56xf32>
    %cst_12 = arith.constant 0.000000e+00 : f32
    %34 = vector.shape_cast %18 : vector<16x1xi1> to vector<16x1xi1>
    %35 = vector.broadcast %34 : vector<16x1xi1> to vector<16x56xi1>
    %36 = vector.broadcast %cst_12 : f32 to vector<16x56xf32>
    %37 = arith.select %35, %33, %36 : vector<16x56xi1>, vector<16x56xf32>
    %cst_13 = arith.constant 5.000000e-01 : f32
    %38 = vector.broadcast %cst_13 : f32 to vector<16x56xf32>
    %39 = arith.mulf %38, %37 : vector<16x56xf32>
    %cst_14 = arith.constant 0.707106769 : f32
    %40 = vector.broadcast %cst_14 : f32 to vector<16x56xf32>
    %41 = arith.mulf %37, %40 : vector<16x56xf32>
    %cst_15 = arith.constant 0.000000e+00 : f32
    %42 = vector.broadcast %cst_15 : f32 to vector<16x56xf32>
    %43 = arith.cmpf oge, %41, %42 : vector<16x56xf32>
    %cst_16 = arith.constant 1.000000e+00 : f32
    %cst_17 = arith.constant -1.000000e+00 : f32
    %44 = vector.broadcast %cst_16 : f32 to vector<16x56xf32>
    %45 = vector.broadcast %cst_17 : f32 to vector<16x56xf32>
    %46 = arith.select %43, %44, %45 : vector<16x56xi1>, vector<16x56xf32>
    %47 = math.absf %41 : vector<16x56xf32>
    %cst_18 = arith.constant 0.327591091 : f32
    %48 = vector.broadcast %cst_18 : f32 to vector<16x56xf32>
    %49 = arith.mulf %48, %47 : vector<16x56xf32>
    %cst_19 = arith.constant 1.000000e+00 : f32
    %50 = vector.broadcast %cst_19 : f32 to vector<16x56xf32>
    %51 = arith.addf %50, %49 : vector<16x56xf32>
    %cst_20 = arith.constant 1.000000e+00 : f32
    %52 = vector.broadcast %cst_20 : f32 to vector<16x56xf32>
    %53 = arith.divf %52, %51 : vector<16x56xf32>
    %cst_21 = arith.constant 1.06140542 : f32
    %54 = vector.broadcast %cst_21 : f32 to vector<16x56xf32>
    %55 = arith.mulf %54, %53 : vector<16x56xf32>
    %cst_22 = arith.constant -1.45315206 : f32
    %56 = vector.broadcast %cst_22 : f32 to vector<16x56xf32>
    %57 = arith.addf %55, %56 : vector<16x56xf32>
    %58 = arith.mulf %57, %53 : vector<16x56xf32>
    %cst_23 = arith.constant 1.42141378 : f32
    %59 = vector.broadcast %cst_23 : f32 to vector<16x56xf32>
    %60 = arith.addf %58, %59 : vector<16x56xf32>
    %61 = arith.mulf %60, %53 : vector<16x56xf32>
    %cst_24 = arith.constant -0.284496725 : f32
    %62 = vector.broadcast %cst_24 : f32 to vector<16x56xf32>
    %63 = arith.addf %61, %62 : vector<16x56xf32>
    %64 = arith.mulf %63, %53 : vector<16x56xf32>
    %cst_25 = arith.constant 0.254829586 : f32
    %65 = vector.broadcast %cst_25 : f32 to vector<16x56xf32>
    %66 = arith.addf %64, %65 : vector<16x56xf32>
    %67 = arith.mulf %66, %53 : vector<16x56xf32>
    %cst_26 = arith.constant 0.000000e+00 : f32
    %68 = vector.broadcast %cst_26 : f32 to vector<16x56xf32>
    %69 = arith.subf %68, %47 : vector<16x56xf32>
    %70 = arith.mulf %69, %47 : vector<16x56xf32>
    %71 = math.exp %70 : vector<16x56xf32>
    %72 = arith.mulf %67, %71 : vector<16x56xf32>
    %cst_27 = arith.constant 1.000000e+00 : f32
    %73 = vector.broadcast %cst_27 : f32 to vector<16x56xf32>
    %74 = arith.subf %73, %72 : vector<16x56xf32>
    %75 = arith.mulf %46, %74 : vector<16x56xf32>
    %cst_28 = arith.constant 1.000000e+00 : f32
    %76 = vector.broadcast %cst_28 : f32 to vector<16x56xf32>
    %77 = arith.addf %76, %75 : vector<16x56xf32>
    %78 = arith.mulf %39, %77 : vector<16x56xf32>
    %c0_29 = arith.constant 0 : index
    %c0_30 = arith.constant 0 : index
    %79 = vector.load %arg3[%c0_29, %c0_30] : memref<56x48xf32, #tpu.memory_space<vmem>>, vector<56x48xf32>
    %cst_31 = arith.constant dense<0.000000e+00> : vector<16x48xf32>
    %80 = tpu.matmul %78, %79, %cst_31 {dimension_numbers = #tpu.dot_dimension_numbers<[1], [0], [0], [1], [0, 0, 1, 1], [], []>} : vector<16x56xf32>, vector<56x48xf32>, vector<16x48xf32> -> vector<16x48xf32>
    %81 = vector.extract_strided_slice %80 {offsets = [0, 16], sizes = [16, 16], strides = [1, 1]} : vector<16x48xf32> to vector<16x16xf32>
    %82 = vector.extract_strided_slice %80 {offsets = [0, 0], sizes = [16, 16], strides = [1, 1]} : vector<16x48xf32> to vector<16x16xf32>
    %83 = vector.extract_strided_slice %82 {offsets = [15, 0], sizes = [1, 16], strides = [1, 1]} : vector<16x16xf32> to vector<1x16xf32>
    %84 = vector.extract_strided_slice %82 {offsets = [0, 0], sizes = [15, 16], strides = [1, 1]} : vector<16x16xf32> to vector<15x16xf32>
    %85 = tpu.concatenate %83, %84 in 0 : vector<1x16xf32>, vector<15x16xf32> -> vector<16x16xf32>
    %cst_32 = arith.constant 0.000000e+00 : f32
    %86 = vector.shape_cast %20 : vector<16x1xi1> to vector<16x1xi1>
    %87 = vector.broadcast %86 : vector<16x1xi1> to vector<16x16xi1>
    %88 = vector.broadcast %cst_32 : f32 to vector<16x16xf32>
    %89 = arith.select %87, %85, %88 : vector<16x16xi1>, vector<16x16xf32>
    %90 = arith.addf %81, %89 : vector<16x16xf32>
    %91 = vector.extract_strided_slice %80 {offsets = [0, 32], sizes = [16, 16], strides = [1, 1]} : vector<16x48xf32> to vector<16x16xf32>
    %92 = vector.extract_strided_slice %91 {offsets = [1, 0], sizes = [15, 16], strides = [1, 1]} : vector<16x16xf32> to vector<15x16xf32>
    %93 = vector.extract_strided_slice %91 {offsets = [0, 0], sizes = [1, 16], strides = [1, 1]} : vector<16x16xf32> to vector<1x16xf32>
    %94 = tpu.concatenate %92, %93 in 0 : vector<15x16xf32>, vector<1x16xf32> -> vector<16x16xf32>
    %cst_33 = arith.constant 0.000000e+00 : f32
    %95 = vector.shape_cast %22 : vector<16x1xi1> to vector<16x1xi1>
    %96 = vector.broadcast %95 : vector<16x1xi1> to vector<16x16xi1>
    %97 = vector.broadcast %cst_33 : f32 to vector<16x16xf32>
    %98 = arith.select %96, %94, %97 : vector<16x16xi1>, vector<16x16xf32>
    %99 = arith.addf %90, %98 : vector<16x16xf32>
    %c1 = arith.constant 1 : index
    %c0_34 = arith.constant 0 : index
    %100 = vector.load %arg5[%c1, %c0_34] : memref<8x128xf32, #tpu.memory_space<vmem>>, vector<1x16xf32>
    %101 = vector.broadcast %100 : vector<1x16xf32> to vector<16x16xf32>
    %102 = arith.addf %99, %101 : vector<16x16xf32>
    %cst_35 = arith.constant 0.000000e+00 : f32
    %103 = vector.shape_cast %18 : vector<16x1xi1> to vector<16x1xi1>
    %104 = vector.broadcast %103 : vector<16x1xi1> to vector<16x16xi1>
    %105 = vector.broadcast %cst_35 : f32 to vector<16x16xf32>
    %106 = arith.select %104, %102, %105 : vector<16x16xi1>, vector<16x16xf32>
    %cst_36 = arith.constant 5.000000e-01 : f32
    %107 = vector.broadcast %cst_36 : f32 to vector<16x16xf32>
    %108 = arith.mulf %107, %106 : vector<16x16xf32>
    %cst_37 = arith.constant 0.707106769 : f32
    %109 = vector.broadcast %cst_37 : f32 to vector<16x16xf32>
    %110 = arith.mulf %106, %109 : vector<16x16xf32>
    %cst_38 = arith.constant 0.000000e+00 : f32
    %111 = vector.broadcast %cst_38 : f32 to vector<16x16xf32>
    %112 = arith.cmpf oge, %110, %111 : vector<16x16xf32>
    %cst_39 = arith.constant 1.000000e+00 : f32
    %cst_40 = arith.constant -1.000000e+00 : f32
    %113 = vector.broadcast %cst_39 : f32 to vector<16x16xf32>
    %114 = vector.broadcast %cst_40 : f32 to vector<16x16xf32>
    %115 = arith.select %112, %113, %114 : vector<16x16xi1>, vector<16x16xf32>
    %116 = math.absf %110 : vector<16x16xf32>
    %cst_41 = arith.constant 0.327591091 : f32
    %117 = vector.broadcast %cst_41 : f32 to vector<16x16xf32>
    %118 = arith.mulf %117, %116 : vector<16x16xf32>
    %cst_42 = arith.constant 1.000000e+00 : f32
    %119 = vector.broadcast %cst_42 : f32 to vector<16x16xf32>
    %120 = arith.addf %119, %118 : vector<16x16xf32>
    %cst_43 = arith.constant 1.000000e+00 : f32
    %121 = vector.broadcast %cst_43 : f32 to vector<16x16xf32>
    %122 = arith.divf %121, %120 : vector<16x16xf32>
    %cst_44 = arith.constant 1.06140542 : f32
    %123 = vector.broadcast %cst_44 : f32 to vector<16x16xf32>
    %124 = arith.mulf %123, %122 : vector<16x16xf32>
    %cst_45 = arith.constant -1.45315206 : f32
    %125 = vector.broadcast %cst_45 : f32 to vector<16x16xf32>
    %126 = arith.addf %124, %125 : vector<16x16xf32>
    %127 = arith.mulf %126, %122 : vector<16x16xf32>
    %cst_46 = arith.constant 1.42141378 : f32
    %128 = vector.broadcast %cst_46 : f32 to vector<16x16xf32>
    %129 = arith.addf %127, %128 : vector<16x16xf32>
    %130 = arith.mulf %129, %122 : vector<16x16xf32>
    %cst_47 = arith.constant -0.284496725 : f32
    %131 = vector.broadcast %cst_47 : f32 to vector<16x16xf32>
    %132 = arith.addf %130, %131 : vector<16x16xf32>
    %133 = arith.mulf %132, %122 : vector<16x16xf32>
    %cst_48 = arith.constant 0.254829586 : f32
    %134 = vector.broadcast %cst_48 : f32 to vector<16x16xf32>
    %135 = arith.addf %133, %134 : vector<16x16xf32>
    %136 = arith.mulf %135, %122 : vector<16x16xf32>
    %cst_49 = arith.constant 0.000000e+00 : f32
    %137 = vector.broadcast %cst_49 : f32 to vector<16x16xf32>
    %138 = arith.subf %137, %116 : vector<16x16xf32>
    %139 = arith.mulf %138, %116 : vector<16x16xf32>
    %140 = math.exp %139 : vector<16x16xf32>
    %141 = arith.mulf %136, %140 : vector<16x16xf32>
    %cst_50 = arith.constant 1.000000e+00 : f32
    %142 = vector.broadcast %cst_50 : f32 to vector<16x16xf32>
    %143 = arith.subf %142, %141 : vector<16x16xf32>
    %144 = arith.mulf %115, %143 : vector<16x16xf32>
    %cst_51 = arith.constant 1.000000e+00 : f32
    %145 = vector.broadcast %cst_51 : f32 to vector<16x16xf32>
    %146 = arith.addf %145, %144 : vector<16x16xf32>
    %147 = arith.mulf %108, %146 : vector<16x16xf32>
    %c0_52 = arith.constant 0 : index
    %c0_53 = arith.constant 0 : index
    %148 = vector.load %arg4[%c0_52, %c0_53] : memref<16x384xf32, #tpu.memory_space<vmem>>, vector<16x384xf32>
    %cst_54 = arith.constant dense<0.000000e+00> : vector<16x384xf32>
    %149 = tpu.matmul %147, %148, %cst_54 {dimension_numbers = #tpu.dot_dimension_numbers<[1], [0], [0], [1], [0, 0, 1, 1], [], []>} : vector<16x16xf32>, vector<16x384xf32>, vector<16x384xf32> -> vector<16x384xf32>
    %150 = vector.extract_strided_slice %149 {offsets = [0, 128], sizes = [16, 128], strides = [1, 1]} : vector<16x384xf32> to vector<16x128xf32>
    %151 = vector.extract_strided_slice %149 {offsets = [0, 0], sizes = [16, 128], strides = [1, 1]} : vector<16x384xf32> to vector<16x128xf32>
    %152 = vector.extract_strided_slice %151 {offsets = [15, 0], sizes = [1, 128], strides = [1, 1]} : vector<16x128xf32> to vector<1x128xf32>
    %153 = vector.extract_strided_slice %151 {offsets = [0, 0], sizes = [15, 128], strides = [1, 1]} : vector<16x128xf32> to vector<15x128xf32>
    %154 = tpu.concatenate %152, %153 in 0 : vector<1x128xf32>, vector<15x128xf32> -> vector<16x128xf32>
    %cst_55 = arith.constant 0.000000e+00 : f32
    %155 = vector.shape_cast %20 : vector<16x1xi1> to vector<16x1xi1>
    %156 = vector.broadcast %155 : vector<16x1xi1> to vector<16x128xi1>
    %157 = vector.broadcast %cst_55 : f32 to vector<16x128xf32>
    %158 = arith.select %156, %154, %157 : vector<16x128xi1>, vector<16x128xf32>
    %159 = arith.addf %150, %158 : vector<16x128xf32>
    %160 = vector.extract_strided_slice %149 {offsets = [0, 256], sizes = [16, 128], strides = [1, 1]} : vector<16x384xf32> to vector<16x128xf32>
    %161 = vector.extract_strided_slice %160 {offsets = [1, 0], sizes = [15, 128], strides = [1, 1]} : vector<16x128xf32> to vector<15x128xf32>
    %162 = vector.extract_strided_slice %160 {offsets = [0, 0], sizes = [1, 128], strides = [1, 1]} : vector<16x128xf32> to vector<1x128xf32>
    %163 = tpu.concatenate %161, %162 in 0 : vector<15x128xf32>, vector<1x128xf32> -> vector<16x128xf32>
    %cst_56 = arith.constant 0.000000e+00 : f32
    %164 = vector.shape_cast %22 : vector<16x1xi1> to vector<16x1xi1>
    %165 = vector.broadcast %164 : vector<16x1xi1> to vector<16x128xi1>
    %166 = vector.broadcast %cst_56 : f32 to vector<16x128xf32>
    %167 = arith.select %165, %163, %166 : vector<16x128xi1>, vector<16x128xf32>
    %168 = arith.addf %159, %167 : vector<16x128xf32>
    %c2 = arith.constant 2 : index
    %c0_57 = arith.constant 0 : index
    %169 = vector.load %arg5[%c2, %c0_57] : memref<8x128xf32, #tpu.memory_space<vmem>>, vector<1x128xf32>
    %170 = vector.broadcast %169 : vector<1x128xf32> to vector<16x128xf32>
    %171 = arith.addf %168, %170 : vector<16x128xf32>
    %cst_58 = arith.constant 0.000000e+00 : f32
    %172 = vector.shape_cast %18 : vector<16x1xi1> to vector<16x1xi1>
    %173 = vector.broadcast %172 : vector<16x1xi1> to vector<16x128xi1>
    %174 = vector.broadcast %cst_58 : f32 to vector<16x128xf32>
    %175 = arith.select %173, %171, %174 : vector<16x128xi1>, vector<16x128xf32>
    %176 = arith.addf %175, %29 : vector<16x128xf32>
    %cst_59 = arith.constant 5.000000e-01 : f32
    %177 = vector.broadcast %cst_59 : f32 to vector<16x128xf32>
    %178 = arith.mulf %177, %176 : vector<16x128xf32>
    %cst_60 = arith.constant 0.707106769 : f32
    %179 = vector.broadcast %cst_60 : f32 to vector<16x128xf32>
    %180 = arith.mulf %176, %179 : vector<16x128xf32>
    %cst_61 = arith.constant 0.000000e+00 : f32
    %181 = vector.broadcast %cst_61 : f32 to vector<16x128xf32>
    %182 = arith.cmpf oge, %180, %181 : vector<16x128xf32>
    %cst_62 = arith.constant 1.000000e+00 : f32
    %cst_63 = arith.constant -1.000000e+00 : f32
    %183 = vector.broadcast %cst_62 : f32 to vector<16x128xf32>
    %184 = vector.broadcast %cst_63 : f32 to vector<16x128xf32>
    %185 = arith.select %182, %183, %184 : vector<16x128xi1>, vector<16x128xf32>
    %186 = math.absf %180 : vector<16x128xf32>
    %cst_64 = arith.constant 0.327591091 : f32
    %187 = vector.broadcast %cst_64 : f32 to vector<16x128xf32>
    %188 = arith.mulf %187, %186 : vector<16x128xf32>
    %cst_65 = arith.constant 1.000000e+00 : f32
    %189 = vector.broadcast %cst_65 : f32 to vector<16x128xf32>
    %190 = arith.addf %189, %188 : vector<16x128xf32>
    %cst_66 = arith.constant 1.000000e+00 : f32
    %191 = vector.broadcast %cst_66 : f32 to vector<16x128xf32>
    %192 = arith.divf %191, %190 : vector<16x128xf32>
    %cst_67 = arith.constant 1.06140542 : f32
    %193 = vector.broadcast %cst_67 : f32 to vector<16x128xf32>
    %194 = arith.mulf %193, %192 : vector<16x128xf32>
    %cst_68 = arith.constant -1.45315206 : f32
    %195 = vector.broadcast %cst_68 : f32 to vector<16x128xf32>
    %196 = arith.addf %194, %195 : vector<16x128xf32>
    %197 = arith.mulf %196, %192 : vector<16x128xf32>
    %cst_69 = arith.constant 1.42141378 : f32
    %198 = vector.broadcast %cst_69 : f32 to vector<16x128xf32>
    %199 = arith.addf %197, %198 : vector<16x128xf32>
    %200 = arith.mulf %199, %192 : vector<16x128xf32>
    %cst_70 = arith.constant -0.284496725 : f32
    %201 = vector.broadcast %cst_70 : f32 to vector<16x128xf32>
    %202 = arith.addf %200, %201 : vector<16x128xf32>
    %203 = arith.mulf %202, %192 : vector<16x128xf32>
    %cst_71 = arith.constant 0.254829586 : f32
    %204 = vector.broadcast %cst_71 : f32 to vector<16x128xf32>
    %205 = arith.addf %203, %204 : vector<16x128xf32>
    %206 = arith.mulf %205, %192 : vector<16x128xf32>
    %cst_72 = arith.constant 0.000000e+00 : f32
    %207 = vector.broadcast %cst_72 : f32 to vector<16x128xf32>
    %208 = arith.subf %207, %186 : vector<16x128xf32>
    %209 = arith.mulf %208, %186 : vector<16x128xf32>
    %210 = math.exp %209 : vector<16x128xf32>
    %211 = arith.mulf %206, %210 : vector<16x128xf32>
    %cst_73 = arith.constant 1.000000e+00 : f32
    %212 = vector.broadcast %cst_73 : f32 to vector<16x128xf32>
    %213 = arith.subf %212, %211 : vector<16x128xf32>
    %214 = arith.mulf %185, %213 : vector<16x128xf32>
    %cst_74 = arith.constant 1.000000e+00 : f32
    %215 = vector.broadcast %cst_74 : f32 to vector<16x128xf32>
    %216 = arith.addf %215, %214 : vector<16x128xf32>
    %217 = arith.mulf %178, %216 : vector<16x128xf32>
    %c0_75 = arith.constant 0 : index
    %c0_76 = arith.constant 0 : index
    %218 = vector.load %arg6[%c0_75, %c0_76] : memref<16x128xf32, #tpu.memory_space<vmem>>, vector<16x128xf32>
    tpu.vector_store %arg6[%c0_75, %c0_76], %217 {strides = array<i32>} : memref<16x128xf32, #tpu.memory_space<vmem>>, vector<16x128xf32>,
    return
  }
}

</mosaic_0001>

<llo_original>
// kernel: tpu_custom_call.1
$region0: #{tpu_custom_call.1}
  #allocation0 [shape = 'u32[]', space=smem, size = 0x4, offset = 0x4, fixed_abs, tag = 'smem constant byte address 0x4 - core index']
  #allocation1 [shape = 'u32[144,128]{1,0:T(1,128)}', space=vmem, size = 0x12000, scoped, tag = 'internal scratch']
  %s0 = inlined_call_operand.vmem [shape: s32[16,1], index: 0, kind: input, shape index: {}]
  %s1 = inlined_call_operand.hbm [shape: f32[16,39], index: 1, kind: input, shape index: {}]
  %s2 = inlined_call_operand.vmem [shape: f32[39,184], index: 2, kind: input, shape index: {}]
  %s3 = inlined_call_operand.vmem [shape: f32[56,48], index: 3, kind: input, shape index: {}]
  %s4 = inlined_call_operand.vmem [shape: f32[16,384], index: 4, kind: input, shape index: {}]
  %s5 = inlined_call_operand.vmem [shape: f32[8,128], index: 5, kind: input, shape index: {}]
  %s6 = inlined_call_operand.hbm [shape: f32[16,128], index: 6, kind: output, shape index: {}]
  %s7 = sld [smem:[#allocation0]]
  $region38: #{tpu_custom_call.1} parent=0
    _
  %s9 = ssub.s32 1, %s7
  %s10 = scalar_select 0, %s9, %s7
  $region1: #{tpu_custom_call.1} parent=0
    #allocation2 [shape = 'u8[8192]{0}', space=vmem, size = 0x2000, scoped, tag = 'input window, operand 1, single buffered']
    #allocation3 [shape = 's32[1]{0}', space=sflag, size = 0x4, scoped, tag = 'scoped memory for tpu_custom_call.1']
    #allocation4 [shape = 's32[1]{0}', space=sflag, size = 0x4, scoped, tag = 'scoped memory for tpu_custom_call.1']
    #allocation5 [shape = 'u8[8192]{0}', space=vmem, size = 0x2000, scoped, tag = 'output window, operand 0, single buffered']
    %11 = vsyncpa [#allocation3], 0
    %12 = vsyncpa [#allocation4], 0
    // Predicated region
    $region2: #{tpu_custom_call.1} parent=1 // pred_check
      _
    $region3: #{tpu_custom_call.1} parent=1 // pred_check_branch
      %14 = sbr.rel (0) target = $region5
    $region4: #{tpu_custom_call.1} parent=1 // pred_region
      _
    $region5: #{tpu_custom_call.1} parent=1 // pred_fallthru
      _
    // Predicated region
    $region6: #{tpu_custom_call.1} parent=1 // pred_check
      _
    $region7: #{tpu_custom_call.1} parent=1 // pred_check_branch
      %16 = sbr.rel (0) target = $region9
    $region8: #{tpu_custom_call.1} parent=1 // pred_region
      %s18 = ssub.s32 256, 256
      %19 = vsyncadd [#allocation3], %s18
      %s20 = sshll.u32 [#allocation2], 4
      %s21 = int_to_ptr.vmem [resolvable:$true] %s20
      %26 = dma.hbm_to_vmem [thread:$0]  %s1, 256, %s21, [#allocation3], 128, 128, 8
    $region9: #{tpu_custom_call.1} parent=1 // pred_fallthru
      _
    // Predicated region
    $region10: #{tpu_custom_call.1} parent=1 // pred_check
      _
    $region11: #{tpu_custom_call.1} parent=1 // pred_check_branch
      %28 = sbr.rel (0) target = $region13
    $region12: #{tpu_custom_call.1} parent=1 // pred_region
      _
    $region13: #{tpu_custom_call.1} parent=1 // pred_fallthru
      _
    // Predicated region
    $region14: #{tpu_custom_call.1} parent=1 // pred_check
      _
    $region15: #{tpu_custom_call.1} parent=1 // pred_check_branch
      %30 = sbr.rel (0) target = $region17
    $region16: #{tpu_custom_call.1} parent=1 // pred_region
      _
    $region17: #{tpu_custom_call.1} parent=1 // pred_fallthru
      _
    // Predicated region
    $region18: #{tpu_custom_call.1} parent=1 // pred_check
      _
    $region19: #{tpu_custom_call.1} parent=1 // pred_check_branch
      %32 = sbr.rel (0) target = $region21
    $region20: #{tpu_custom_call.1} parent=1 // pred_region
      _
    $region21: #{tpu_custom_call.1} parent=1 // pred_fallthru
      _
    // Predicated region
    $region22: #{tpu_custom_call.1} parent=1 // pred_check
      _
    $region23: #{tpu_custom_call.1} parent=1 // pred_check_branch
      %34 = sbr.rel (0) target = $region25
    $region24: #{tpu_custom_call.1} parent=1 // pred_region
      _
    $region25: #{tpu_custom_call.1} parent=1 // pred_fallthru
      _
    // Predicated region
    $region26: #{tpu_custom_call.1} parent=1 // pred_check
      _
    $region27: #{tpu_custom_call.1} parent=1 // pred_check_branch
      %36 = sbr.rel (0) target = $region29
    $region28: #{tpu_custom_call.1} parent=1 // pred_region
      %37 = dma.done [#allocation3], 256
    $region29: #{tpu_custom_call.1} parent=1 // pred_fallthru
      _
    %v38 = vlaneseq
    %v39 = vshrl.u32 %v38, 7
    %v40 = vadd.s32 %v39, 8
    %vm41 = vcmp.lt.s32.totalorder %v39, 0
    %v42 = vsub.s32 0, %v39
    %v43 = vsel %vm41, %v42, %v39
    %v44 = vshrl.u32 %v43, 3
    %v45 = vand.u32 %v43, 7
    %v46 = vsub.s32 0, %v45
    %v47 = vsel %vm41, %v46, %v45
    %vm48 = vcmp.lt.s32.totalorder %v40, 0
    %v49 = vsub.s32 0, %v40
    %v50 = vsel %vm48, %v49, %v40
    %v51 = vshrl.u32 %v50, 3
    %v52 = vand.u32 %v50, 7
    %v53 = vsub.s32 0, %v52
    %v54 = vsel %vm48, %v53, %v52
    %vm55 = vcmp.ne.s32.totalorder %v47, 0
    %vm56 = vcmp.ne.s32.totalorder %v54, 0
    %vm57 = vcmp.lt.s32.totalorder %v47, 0
    %vm58 = vcmp.lt.s32.totalorder %v54, 0
    %vm59 = vmand %vm57, %vm55
    %vm60 = vmand %vm58, %vm56
    %v61 = vadd.s32 %v47, 8
    %v62 = vadd.s32 %v54, 8
    %v63 = vsel %vm59, %v61, %v47
    %v64 = vsel %vm60, %v62, %v54
    %v65 = vld [vmem:[%s0] sm:$0xff]
    %v66 = vld [vmem:[%s0 + $0x8] sm:$0xff]
    %vm67 = vcmp.lt.s32.totalorder %v63, %v65
    %vm68 = vcmp.lt.s32.totalorder %v64, %v66
    %vm69 = vcmp.gt.s32.totalorder %v63, 0
    %vm70 = vcmp.gt.s32.totalorder %v64, 0
    %vm71 = vcmp.lt.s32.totalorder %v63, 7
    %vm72 = vcmp.lt.s32.totalorder %v64, 7
    %v73 = vld [vmem:[#allocation2] sm:$0xff]
    %v74 = vld [vmem:[#allocation2 + $0x8] sm:$0xff]
    %v75 = vld [vmem:[%s2] sm:$0xff]
    %v76 = vld [vmem:[%s2 + $0x8] sm:$0xff]
    %v77 = vld [vmem:[%s2 + $0x10] sm:$0xff]
    %v78 = vld [vmem:[%s2 + $0x18] sm:$0xff]
    %v79 = vld [vmem:[%s2 + $0x20] sm:$0xff]
    %v80 = vld [vmem:[%s2 + $0x28] sm:$0xff]
    %v81 = vld [vmem:[%s2 + $0x30] sm:$0xff]
    %v82 = vld [vmem:[%s2 + $0x38] sm:$0xff]
    %v83 = vld [vmem:[%s2 + $0x40] sm:$0x7f]
    %v84 = vld [vmem:[%s2 + $0x48] sm:$0x7f]
    %vm85 = vcmask 318464
    %v87 = vsel %vm85, %v73, 0
    %v90 = vsel %vm85, %v74, 0
    %vm92 = vcmask 1046528
    %v94 = vsel %vm92, %v83, 0
    %v97 = vsel %vm92, %v84, 0
    %99 = vmatprep.subr.mxu0 %v76
    %100 = vmatpush1.msra.mxu0 %v75
    %101 = vmatprep.subr.mxu0 %v78
    %102 = vmatpush1.msra.mxu0 %v77
    %103 = vmatprep.subr.mxu0 %v80
    %104 = vmatpush1.msra.mxu0 %v79
    %105 = vmatprep.subr.mxu0 %v82
    %106 = vmatpush1.msra.mxu0 %v81
    %107 = vmatprep.subr.mxu0 %v97
    %108 = vmatpush1.msra.mxu0 %v94
    %109 = vmatprep.subr.mxu0 0.0
    %110 = vmatpush1.msra.mxu0 0.0
    %111 = vmatprep.subr.mxu0 0.0
    %112 = vmatpush1.msra.mxu0 0.0
    %113 = vmatprep.subr.mxu0 0.0
    %114 = vmatpush1.msra.mxu0 0.0
    %115 = vmatprep.subr.mxu0 0.0
    %116 = vmatpush1.msra.mxu0 0.0
    %117 = vmatprep.subr.mxu0 0.0
    %118 = vmatpush1.msra.mxu0 0.0
    %119 = vmatprep.subr.mxu0 0.0
    %120 = vmatpush1.msra.mxu0 0.0
    %121 = vmatprep.subr.mxu0 0.0
    %122 = vmatpush1.msra.mxu0 0.0
    %123 = vmatprep.subr.mxu0 0.0
    %124 = vmatpush1.msra.mxu0 0.0
    %125 = vmatprep.subr.mxu0 0.0
    %126 = vmatpush1.msra.mxu0 0.0
    %127 = vmatprep.subr.mxu0 0.0
    %128 = vmatpush1.msra.mxu0 0.0
    %129 = vmatprep.subr.mxu0 0.0
    %130 = vmatpush1.msra.mxu0 0.0
    %131 = vmatprep.subr.mxu0 0.0
    %132 = vmatpush1.msra.mxu0 0.0
    %133 = vmatprep.subr.mxu0 0.0
    %134 = vmatpush1.msra.mxu0 0.0
    %135 = vmatprep.subr.mxu0 0.0
    %136 = vmatpush1.msra.mxu0 0.0
    %137 = vmatprep.subr.mxu0 0.0
    %138 = vmatpush1.msra.mxu0 0.0
    %139 = vmatprep.subr.mxu0 0.0
    %140 = vmatpush1.msra.mxu0 0.0
    %141 = vmatprep.subr.mxu0 0.0
    %142 = vmatpush1.msra.mxu0 0.0
    %143 = vmatprep.subr.mxu0 0.0
    %144 = vmatpush1.msra.mxu0 0.0
    %145 = vmatprep.subr.mxu0 0.0
    %146 = vmatpush1.msra.mxu0 0.0
    %147 = vmatprep.subr.mxu0 0.0
    %148 = vmatpush1.msra.mxu0 0.0
    %149 = vmatprep.subr.mxu0 0.0
    %150 = vmatpush1.msra.mxu0 0.0
    %151 = vmatprep.subr.mxu0 0.0
    %152 = vmatpush1.msra.mxu0 0.0
    %153 = vmatprep.subr.mxu0 0.0
    %154 = vmatpush1.msra.mxu0 0.0
    %155 = vmatprep.subr.mxu0 0.0
    %156 = vmatpush1.msra.mxu0 0.0
    %157 = vmatprep.subr.mxu0 0.0
    %158 = vmatpush1.msra.mxu0 0.0
    %159 = vmatprep.subr.mxu0 0.0
    %160 = vmatpush1.msra.mxu0 0.0
    %161 = vmatprep.subr.mxu0 0.0
    %162 = vmatpush1.msra.mxu0 0.0
    %163 = vmatprep.mubr.f32.mxu0 0.0
    %164 = vmatmul.mubr.f32.gmra.mrb[0].mxu0 %v87
    %v165 = vpop.f32.mrb[0].mxu0
    %v166 = vadd.f32 0.0, %v165
    %v167 = vpop.f32.mrb[0].mxu0
    %v168 = vadd.f32 0.0, %v167
    %169 = vmatprep.mubr.f32.mxu0 0.0
    %170 = vmatmul.mubr.f32.gmra.mrb[0].mxu0 %v90
    %v171 = vpop.f32.mrb[0].mxu0
    %v172 = vadd.f32 0.0, %v171
    %v173 = vpop.f32.mrb[0].mxu0
    %v174 = vadd.f32 0.0, %v173
    %175 = vdwg.mxu0
    %v176 = vld [vmem:[%s5 + $0x3] sm:$0x1]
    %v177 = vlaneseq
    %v178 = vshrl.u32 %v177, 7
    %v179 = vsub.s32 0, %v178
    %v180 = vrot.slane %v176, %v179
    %v181 = vadd.f32 %v166, %v180
    %v182 = vadd.f32 %v172, %v180
    %v183 = vld [vmem:[%s5] sm:$0x1]
    %v184 = vlaneseq
    %v185 = vshrl.u32 %v184, 7
    %v186 = vsub.s32 0, %v185
    %v187 = vrot.slane %v183, %v186
    %v188 = vadd.f32 %v168, %v187
    %v189 = vadd.f32 %v174, %v187
    %v190 = vsel %vm67, 1, 0
    %v191 = vsel %vm68, 1, 0
    %192 = vset.pattern.permute.xlu0 0
    %193 = vperm.xlu0 %192, %v190
    %v194 = vpop.permute.xlu0 %193
    %195 = vset.pattern.permute.xlu0 0
    %196 = vperm.xlu0 %195, %v191
    %v197 = vpop.permute.xlu0 %196
    %vm198 = vcmp.eq.s32.totalorder %v194, 1
    %vm199 = vcmp.eq.s32.totalorder %v197, 1
    %v200 = vsel %vm198, %v188, 0.0
    %v201 = vsel %vm199, %v189, 0.0
    %v202 = vmul.f32 %v200, 0.5
    %v203 = vmul.f32 %v201, 0.5
    %v204 = vmul.f32 %v200, 0.70710677
    %v205 = vmul.f32 %v201, 0.70710677
    %vm206 = vcmp.ge.f32.partialorder %v204, 0.0
    %vm207 = vcmp.ge.f32.partialorder %v205, 0.0
    %v208 = vsel %vm206, 1.0, -1.0
    %v209 = vsel %vm207, 1.0, -1.0
    %v210 = vand.u32 2147483647, %v204
    %v211 = vand.u32 2147483647, %v205
    %v212 = vmul.f32 %v210, 0.3275911
    %v213 = vmul.f32 %v211, 0.3275911
    %v214 = vadd.f32 %v212, 1.0
    %v215 = vadd.f32 %v213, 1.0
    %v216 = vrcp.pop %v214
    %v217 = vmul.f32 1.0, %v216
    %v218 = vrcp.pop %v215
    %v219 = vmul.f32 1.0, %v218
    %v220 = vmul.f32 %v217, 1.0614054
    %v221 = vmul.f32 %v219, 1.0614054
    %v222 = vadd.f32 %v220, -1.4531521
    %v223 = vadd.f32 %v221, -1.4531521
    %v224 = vmul.f32 %v222, %v217
    %v225 = vmul.f32 %v223, %v219
    %v226 = vadd.f32 %v224, 1.4214138
    %v227 = vadd.f32 %v225, 1.4214138
    %v228 = vmul.f32 %v226, %v217
    %v229 = vmul.f32 %v227, %v219
    %v230 = vadd.f32 %v228, -0.28449672
    %v231 = vadd.f32 %v229, -0.28449672
    %v232 = vmul.f32 %v230, %v217
    %v233 = vmul.f32 %v231, %v219
    %v234 = vadd.f32 %v232, 0.2548296
    %v235 = vadd.f32 %v233, 0.2548296
    %v236 = vmul.f32 %v234, %v217
    %v237 = vmul.f32 %v235, %v219
    %v238 = vsub.f32 0.0, %v210
    %v239 = vsub.f32 0.0, %v211
    %v240 = vmul.f32 %v238, %v210
    %v241 = vmul.f32 %v239, %v211
    %v242 = vmul.f32 %v240, 1.442695
    %v243 = vpow.pop %v242
    %v244 = vmul.f32 %v241, 1.442695
    %v245 = vpow.pop %v244
    %v246 = vmul.f32 %v236, %v243
    %v247 = vmul.f32 %v237, %v245
    %v248 = vsub.f32 1.0, %v246
    %v249 = vsub.f32 1.0, %v247
    %v250 = vmul.f32 %v208, %v248
    %v251 = vmul.f32 %v209, %v249
    %v252 = vadd.f32 %v250, 1.0
    %v253 = vadd.f32 %v251, 1.0
    %v254 = vmul.f32 %v202, %v252
    %v255 = vmul.f32 %v203, %v253
    %v256 = vld [vmem:[%s3] sm:$0xff]
    %v257 = vld [vmem:[%s3 + $0x8] sm:$0xff]
    %v258 = vld [vmem:[%s3 + $0x10] sm:$0xff]
    %v259 = vld [vmem:[%s3 + $0x18] sm:$0xff]
    %v260 = vld [vmem:[%s3 + $0x20] sm:$0xff]
    %v261 = vld [vmem:[%s3 + $0x28] sm:$0xff]
    %v262 = vld [vmem:[%s3 + $0x30] sm:$0xff]
    %vm263 = vcmask 457728
    %v265 = vsel %vm263, %v254, 0
    %v268 = vsel %vm263, %v255, 0
    %270 = vmatprep.subr.mxu0 0.0
    %271 = vmatpush1.msra.mxu0 %v256
    %272 = vmatprep.subr.mxu0 0.0
    %273 = vmatpush1.msra.mxu0 %v257
    %274 = vmatprep.subr.mxu0 0.0
    %275 = vmatpush1.msra.mxu0 %v258
    %276 = vmatprep.subr.mxu0 0.0
    %277 = vmatpush1.msra.mxu0 %v259
    %278 = vmatprep.subr.mxu0 0.0
    %279 = vmatpush1.msra.mxu0 %v260
    %280 = vmatprep.subr.mxu0 0.0
    %281 = vmatpush1.msra.mxu0 %v261
    %282 = vmatprep.subr.mxu0 0.0
    %283 = vmatpush1.msra.mxu0 %v262
    %284 = vmatprep.subr.mxu0 0.0
    %285 = vmatpush1.msra.mxu0 0.0
    %286 = vmatprep.subr.mxu0 0.0
    %287 = vmatpush1.msra.mxu0 0.0
    %288 = vmatprep.subr.mxu0 0.0
    %289 = vmatpush1.msra.mxu0 0.0
    %290 = vmatprep.subr.mxu0 0.0
    %291 = vmatpush1.msra.mxu0 0.0
    %292 = vmatprep.subr.mxu0 0.0
    %293 = vmatpush1.msra.mxu0 0.0
    %294 = vmatprep.subr.mxu0 0.0
    %295 = vmatpush1.msra.mxu0 0.0
    %296 = vmatprep.subr.mxu0 0.0
    %297 = vmatpush1.msra.mxu0 0.0
    %298 = vmatprep.subr.mxu0 0.0
    %299 = vmatpush1.msra.mxu0 0.0
    %300 = vmatprep.subr.mxu0 0.0
    %301 = vmatpush1.msra.mxu0 0.0
    %302 = vmatprep.subr.mxu0 0.0
    %303 = vmatpush1.msra.mxu0 0.0
    %304 = vmatprep.subr.mxu0 0.0
    %305 = vmatpush1.msra.mxu0 0.0
    %306 = vmatprep.subr.mxu0 0.0
    %307 = vmatpush1.msra.mxu0 0.0
    %308 = vmatprep.subr.mxu0 0.0
    %309 = vmatpush1.msra.mxu0 0.0
    %310 = vmatprep.subr.mxu0 0.0
    %311 = vmatpush1.msra.mxu0 0.0
    %312 = vmatprep.subr.mxu0 0.0
    %313 = vmatpush1.msra.mxu0 0.0
    %314 = vmatprep.subr.mxu0 0.0
    %315 = vmatpush1.msra.mxu0 0.0
    %316 = vmatprep.subr.mxu0 0.0
    %317 = vmatpush1.msra.mxu0 0.0
    %318 = vmatprep.subr.mxu0 0.0
    %319 = vmatpush1.msra.mxu0 0.0
    %320 = vmatprep.subr.mxu0 0.0
    %321 = vmatpush1.msra.mxu0 0.0
    %322 = vmatprep.subr.mxu0 0.0
    %323 = vmatpush1.msra.mxu0 0.0
    %324 = vmatprep.subr.mxu0 0.0
    %325 = vmatpush1.msra.mxu0 0.0
    %326 = vmatprep.subr.mxu0 0.0
    %327 = vmatpush1.msra.mxu0 0.0
    %328 = vmatprep.subr.mxu0 0.0
    %329 = vmatpush1.msra.mxu0 0.0
    %330 = vmatprep.subr.mxu0 0.0
    %331 = vmatpush1.msra.mxu0 0.0
    %332 = vmatprep.subr.mxu0 0.0
    %333 = vmatpush1.msra.mxu0 0.0
    %334 = vmatprep.mubr.f32.mxu0 0.0
    %335 = vmatmul.mubr.f32.gmra.mrb[0].mxu0 %v265
    %v336 = vpop.f32.mrb[0].mxu0
    %v337 = vadd.f32 0.0, %v336
    %v338 = vpop.f32.mrb[0].mxu0
    %339 = vmatprep.mubr.f32.mxu0 0.0
    %340 = vmatmul.mubr.f32.gmra.mrb[0].mxu0 %v268
    %v341 = vpop.f32.mrb[0].mxu0
    %v342 = vadd.f32 0.0, %v341
    %v343 = vpop.f32.mrb[0].mxu0
    %344 = vdwg.mxu0
    %v346 = vrot.slane %v342, 7
    %vm349 = vcmask 1040384
    %v350 = vrot.slane %v337, 7
    %v351 = vsel %vm349, %v350, %v346
    %v354 = vsel %vm349, %v346, %v350
    %v355 = vsel %vm69, 1, 0
    %v356 = vsel %vm70, 1, 0
    %vm357 = vcmp.eq.s32.totalorder %v355, 1
    %vm358 = vcmp.eq.s32.totalorder %v356, 1
    %v359 = vsel %vm357, %v354, 0.0
    %v360 = vsel %vm358, %v351, 0.0
    %363 = vrot.lane.b32.xlu0 %v359, 16
    %v364 = vpop.permute.xlu0 %363
    %365 = vrot.lane.b32.xlu0 %v360, 16
    %v366 = vpop.permute.xlu0 %365
    %v369 = vadd.f32 %v337, %v364
    %v370 = vadd.f32 %v342, %v366
    %v371 = vrot.slane %v337, 1
    %v372 = vrot.slane %v342, 1
    %v373 = vsel %vm92, %v371, %v372
    %v377 = vsel %vm92, %v372, %v371
    %v378 = vsel %vm71, 1, 0
    %v379 = vsel %vm72, 1, 0
    %vm380 = vcmp.eq.s32.totalorder %v378, 1
    %vm381 = vcmp.eq.s32.totalorder %v379, 1
    %v382 = vsel %vm380, %v373, 0.0
    %v383 = vsel %vm381, %v377, 0.0
    %386 = vrot.lane.b32.xlu0 %v382, 112
    %v387 = vpop.permute.xlu0 %386
    %388 = vrot.lane.b32.xlu0 %v383, 112
    %v389 = vpop.permute.xlu0 %388
    %v392 = vadd.f32 %v369, %v387
    %v393 = vadd.f32 %v370, %v389
    %v394 = vld [vmem:[%s5 + $0x1] sm:$0x1]
    %v395 = vlaneseq
    %v396 = vshrl.u32 %v395, 7
    %v397 = vsub.s32 0, %v396
    %v398 = vrot.slane %v394, %v397
    %400 = vrot.lane.b32.xlu0 %v398, 16
    %v401 = vpop.permute.xlu0 %400
    %v403 = vadd.f32 %v392, %v401
    %v404 = vadd.f32 %v393, %v401
    %v405 = vsel %vm198, %v403, 0.0
    %v406 = vsel %vm199, %v404, 0.0
    %v407 = vmul.f32 %v405, 0.5
    %v408 = vmul.f32 %v406, 0.5
    %v409 = vmul.f32 %v405, 0.70710677
    %v410 = vmul.f32 %v406, 0.70710677
    %vm411 = vcmp.ge.f32.partialorder %v409, 0.0
    %vm412 = vcmp.ge.f32.partialorder %v410, 0.0
    %v413 = vsel %vm411, 1.0, -1.0
    %v414 = vsel %vm412, 1.0, -1.0
    %v415 = vand.u32 2147483647, %v409
    %v416 = vand.u32 2147483647, %v410
    %v417 = vmul.f32 %v415, 0.3275911
    %v418 = vmul.f32 %v416, 0.3275911
    %v419 = vadd.f32 %v417, 1.0
    %v420 = vadd.f32 %v418, 1.0
    %v421 = vrcp.pop %v419
    %v422 = vmul.f32 1.0, %v421
    %v423 = vrcp.pop %v420
    %v424 = vmul.f32 1.0, %v423
    %v425 = vmul.f32 %v422, 1.0614054
    %v426 = vmul.f32 %v424, 1.0614054
    %v427 = vadd.f32 %v425, -1.4531521
    %v428 = vadd.f32 %v426, -1.4531521
    %v429 = vmul.f32 %v427, %v422
    %v430 = vmul.f32 %v428, %v424
    %v431 = vadd.f32 %v429, 1.4214138
    %v432 = vadd.f32 %v430, 1.4214138
    %v433 = vmul.f32 %v431, %v422
    %v434 = vmul.f32 %v432, %v424
    %v435 = vadd.f32 %v433, -0.28449672
    %v436 = vadd.f32 %v434, -0.28449672
    %v437 = vmul.f32 %v435, %v422
    %v438 = vmul.f32 %v436, %v424
    %v439 = vadd.f32 %v437, 0.2548296
    %v440 = vadd.f32 %v438, 0.2548296
    %v441 = vmul.f32 %v439, %v422
    %v442 = vmul.f32 %v440, %v424
    %v443 = vsub.f32 0.0, %v415
    %v444 = vsub.f32 0.0, %v416
    %v445 = vmul.f32 %v443, %v415
    %v446 = vmul.f32 %v444, %v416
    %v447 = vmul.f32 %v445, 1.442695
    %v448 = vpow.pop %v447
    %v449 = vmul.f32 %v446, 1.442695
    %v450 = vpow.pop %v449
    %v451 = vmul.f32 %v441, %v448
    %v452 = vmul.f32 %v442, %v450
    %v453 = vsub.f32 1.0, %v451
    %v454 = vsub.f32 1.0, %v452
    %v455 = vmul.f32 %v413, %v453
    %v456 = vmul.f32 %v414, %v454
    %v457 = vadd.f32 %v455, 1.0
    %v458 = vadd.f32 %v456, 1.0
    %v459 = vmul.f32 %v407, %v457
    %v460 = vmul.f32 %v408, %v458
    %v461 = vld [vmem:[%s4] sm:$0xff]
    %v462 = vld [vmem:[%s4 + $0x8] sm:$0xff]
    %v463 = vld [vmem:[%s4 + $0x10] sm:$0xff]
    %v464 = vld [vmem:[%s4 + $0x18] sm:$0xff]
    %v465 = vld [vmem:[%s4 + $0x20] sm:$0xff]
    %v466 = vld [vmem:[%s4 + $0x28] sm:$0xff]
    %469 = vrot.lane.b32.xlu0 %v459, 112
    %v470 = vpop.permute.xlu0 %469
    %471 = vrot.lane.b32.xlu0 %v460, 112
    %v472 = vpop.permute.xlu0 %471
    %vm473 = vcmask 130048
    %v474 = vsel %vm473, %v470, 0
    %v476 = vsel %vm473, %v472, 0
    %478 = vmatprep.subr.mxu0 %v462
    %479 = vmatpush1.msra.mxu0 %v461
    %480 = vmatprep.subr.mxu0 %v465
    %481 = vmatpush1.msra.mxu0 %v464
    %482 = vmatprep.subr.mxu0 0.0
    %483 = vmatpush1.msra.mxu0 0.0
    %484 = vmatprep.subr.mxu0 0.0
    %485 = vmatpush1.msra.mxu0 0.0
    %486 = vmatprep.subr.mxu0 0.0
    %487 = vmatpush1.msra.mxu0 0.0
    %488 = vmatprep.subr.mxu0 0.0
    %489 = vmatpush1.msra.mxu0 0.0
    %490 = vmatprep.subr.mxu0 0.0
    %491 = vmatpush1.msra.mxu0 0.0
    %492 = vmatprep.subr.mxu0 0.0
    %493 = vmatpush1.msra.mxu0 0.0
    %494 = vmatprep.subr.mxu0 0.0
    %495 = vmatpush1.msra.mxu0 0.0
    %496 = vmatprep.subr.mxu0 0.0
    %497 = vmatpush1.msra.mxu0 0.0
    %498 = vmatprep.subr.mxu0 0.0
    %499 = vmatpush1.msra.mxu0 0.0
    %500 = vmatprep.subr.mxu0 0.0
    %501 = vmatpush1.msra.mxu0 0.0
    %502 = vmatprep.subr.mxu0 0.0
    %503 = vmatpush1.msra.mxu0 0.0
    %504 = vmatprep.subr.mxu0 0.0
    %505 = vmatpush1.msra.mxu0 0.0
    %506 = vmatprep.subr.mxu0 0.0
    %507 = vmatpush1.msra.mxu0 0.0
    %508 = vmatprep.subr.mxu0 0.0
    %509 = vmatpush1.msra.mxu0 0.0
    %510 = vmatprep.subr.mxu0 0.0
    %511 = vmatpush1.msra.mxu0 0.0
    %512 = vmatprep.subr.mxu0 0.0
    %513 = vmatpush1.msra.mxu0 0.0
    %514 = vmatprep.subr.mxu0 0.0
    %515 = vmatpush1.msra.mxu0 0.0
    %516 = vmatprep.subr.mxu0 0.0
    %517 = vmatpush1.msra.mxu0 0.0
    %518 = vmatprep.subr.mxu0 0.0
    %519 = vmatpush1.msra.mxu0 0.0
    %520 = vmatprep.subr.mxu0 0.0
    %521 = vmatpush1.msra.mxu0 0.0
    %522 = vmatprep.subr.mxu0 0.0
    %523 = vmatpush1.msra.mxu0 0.0
    %524 = vmatprep.subr.mxu0 0.0
    %525 = vmatpush1.msra.mxu0 0.0
    %526 = vmatprep.subr.mxu0 0.0
    %527 = vmatpush1.msra.mxu0 0.0
    %528 = vmatprep.subr.mxu0 0.0
    %529 = vmatpush1.msra.mxu0 0.0
    %530 = vmatprep.subr.mxu0 0.0
    %531 = vmatpush1.msra.mxu0 0.0
    %532 = vmatprep.subr.mxu0 0.0
    %533 = vmatpush1.msra.mxu0 0.0
    %534 = vmatprep.subr.mxu0 0.0
    %535 = vmatpush1.msra.mxu0 0.0
    %536 = vmatprep.subr.mxu0 0.0
    %537 = vmatpush1.msra.mxu0 0.0
    %538 = vmatprep.subr.mxu0 0.0
    %539 = vmatpush1.msra.mxu0 0.0
    %540 = vmatprep.subr.mxu0 0.0
    %541 = vmatpush1.msra.mxu0 0.0
    %542 = vmatprep.mubr.f32.mxu0 0.0
    %543 = vmatmul.mubr.f32.gmra.mrb[0].mxu0 %v474
    %v544 = vpop.f32.mrb[0].mxu0
    %v545 = vadd.f32 0.0, %v544
    %v546 = vpop.f32.mrb[0].mxu0
    %v547 = vadd.f32 0.0, %v546
    %548 = vmatprep.mubr.f32.mxu0 0.0
    %549 = vmatmul.mubr.f32.gmra.mrb[0].mxu0 %v476
    %v550 = vpop.f32.mrb[0].mxu0
    %v551 = vadd.f32 0.0, %v550
    %v552 = vpop.f32.mrb[0].mxu0
    %v553 = vadd.f32 0.0, %v552
    %554 = vdwg.mxu0
    %555 = vmatprep.subr.mxu0 0.0
    %556 = vmatpush1.msra.mxu0 %v463
    %557 = vmatprep.subr.mxu0 0.0
    %558 = vmatpush1.msra.mxu0 %v466
    %559 = vmatprep.subr.mxu0 0.0
    %560 = vmatpush1.msra.mxu0 0.0
    %561 = vmatprep.subr.mxu0 0.0
    %562 = vmatpush1.msra.mxu0 0.0
    %563 = vmatprep.subr.mxu0 0.0
    %564 = vmatpush1.msra.mxu0 0.0
    %565 = vmatprep.subr.mxu0 0.0
    %566 = vmatpush1.msra.mxu0 0.0
    %567 = vmatprep.subr.mxu0 0.0
    %568 = vmatpush1.msra.mxu0 0.0
    %569 = vmatprep.subr.mxu0 0.0
    %570 = vmatpush1.msra.mxu0 0.0
    %571 = vmatprep.subr.mxu0 0.0
    %572 = vmatpush1.msra.mxu0 0.0
    %573 = vmatprep.subr.mxu0 0.0
    %574 = vmatpush1.msra.mxu0 0.0
    %575 = vmatprep.subr.mxu0 0.0
    %576 = vmatpush1.msra.mxu0 0.0
    %577 = vmatprep.subr.mxu0 0.0
    %578 = vmatpush1.msra.mxu0 0.0
    %579 = vmatprep.subr.mxu0 0.0
    %580 = vmatpush1.msra.mxu0 0.0
    %581 = vmatprep.subr.mxu0 0.0
    %582 = vmatpush1.msra.mxu0 0.0
    %583 = vmatprep.subr.mxu0 0.0
    %584 = vmatpush1.msra.mxu0 0.0
    %585 = vmatprep.subr.mxu0 0.0
    %586 = vmatpush1.msra.mxu0 0.0
    %587 = vmatprep.subr.mxu0 0.0
    %588 = vmatpush1.msra.mxu0 0.0
    %589 = vmatprep.subr.mxu0 0.0
    %590 = vmatpush1.msra.mxu0 0.0
    %591 = vmatprep.subr.mxu0 0.0
    %592 = vmatpush1.msra.mxu0 0.0
    %593 = vmatprep.subr.mxu0 0.0
    %594 = vmatpush1.msra.mxu0 0.0
    %595 = vmatprep.subr.mxu0 0.0
    %596 = vmatpush1.msra.mxu0 0.0
    %597 = vmatprep.subr.mxu0 0.0
    %598 = vmatpush1.msra.mxu0 0.0
    %599 = vmatprep.subr.mxu0 0.0
    %600 = vmatpush1.msra.mxu0 0.0
    %601 = vmatprep.subr.mxu0 0.0
    %602 = vmatpush1.msra.mxu0 0.0
    %603 = vmatprep.subr.mxu0 0.0
    %604 = vmatpush1.msra.mxu0 0.0
    %605 = vmatprep.subr.mxu0 0.0
    %606 = vmatpush1.msra.mxu0 0.0
    %607 = vmatprep.subr.mxu0 0.0
    %608 = vmatpush1.msra.mxu0 0.0
    %609 = vmatprep.subr.mxu0 0.0
    %610 = vmatpush1.msra.mxu0 0.0
    %611 = vmatprep.subr.mxu0 0.0
    %612 = vmatpush1.msra.mxu0 0.0
    %613 = vmatprep.subr.mxu0 0.0
    %614 = vmatpush1.msra.mxu0 0.0
    %615 = vmatprep.subr.mxu0 0.0
    %616 = vmatpush1.msra.mxu0 0.0
    %617 = vmatprep.subr.mxu0 0.0
    %618 = vmatpush1.msra.mxu0 0.0
    %619 = vmatprep.mubr.f32.mxu0 0.0
    %620 = vmatmul.mubr.f32.gmra.mrb[0].mxu0 %v474
    %v621 = vpop.f32.mrb[0].mxu0
    %v622 = vadd.f32 0.0, %v621
    %v623 = vpop.f32.mrb[0].mxu0
    %624 = vmatprep.mubr.f32.mxu0 0.0
    %625 = vmatmul.mubr.f32.gmra.mrb[0].mxu0 %v476
    %v626 = vpop.f32.mrb[0].mxu0
    %v627 = vadd.f32 0.0, %v626
    %v628 = vpop.f32.mrb[0].mxu0
    %629 = vdwg.mxu0
    %v631 = vrot.slane %v551, 7
    %v634 = vrot.slane %v545, 7
    %v635 = vsel %vm349, %v634, %v631
    %v638 = vsel %vm349, %v631, %v634
    %v639 = vsel %vm357, %v638, 0.0
    %v640 = vsel %vm358, %v635, 0.0
    %v641 = vadd.f32 %v547, %v639
    %v642 = vadd.f32 %v553, %v640
    %v645 = vrot.slane %v622, 1
    %v646 = vrot.slane %v627, 1
    %v647 = vsel %vm92, %v645, %v646
    %v651 = vsel %vm92, %v646, %v645
    %v652 = vsel %vm380, %v647, 0.0
    %v653 = vsel %vm381, %v651, 0.0
    %v654 = vadd.f32 %v641, %v652
    %v655 = vadd.f32 %v642, %v653
    %v656 = vld [vmem:[%s5 + $0x2] sm:$0x1]
    %v657 = vlaneseq
    %v658 = vshrl.u32 %v657, 7
    %v659 = vsub.s32 0, %v658
    %v660 = vrot.slane %v656, %v659
    %v661 = vadd.f32 %v654, %v660
    %v662 = vadd.f32 %v655, %v660
    %v663 = vsel %vm198, %v661, 0.0
    %v664 = vsel %vm199, %v662, 0.0
    %v665 = vadd.f32 %v663, %v181
    %v666 = vadd.f32 %v664, %v182
    %v667 = vmul.f32 %v665, 0.5
    %v668 = vmul.f32 %v666, 0.5
    %v669 = vmul.f32 %v665, 0.70710677
    %v670 = vmul.f32 %v666, 0.70710677
    %vm671 = vcmp.ge.f32.partialorder %v669, 0.0
    %vm672 = vcmp.ge.f32.partialorder %v670, 0.0
    %v673 = vsel %vm671, 1.0, -1.0
    %v674 = vsel %vm672, 1.0, -1.0
    %v675 = vand.u32 2147483647, %v669
    %v676 = vand.u32 2147483647, %v670
    %v677 = vmul.f32 %v675, 0.3275911
    %v678 = vmul.f32 %v676, 0.3275911
    %v679 = vadd.f32 %v677, 1.0
    %v680 = vadd.f32 %v678, 1.0
    %v681 = vrcp.pop %v679
    %v682 = vmul.f32 1.0, %v681
    %v683 = vrcp.pop %v680
    %v684 = vmul.f32 1.0, %v683
    %v685 = vmul.f32 %v682, 1.0614054
    %v686 = vmul.f32 %v684, 1.0614054
    %v687 = vadd.f32 %v685, -1.4531521
    %v688 = vadd.f32 %v686, -1.4531521
    %v689 = vmul.f32 %v687, %v682
    %v690 = vmul.f32 %v688, %v684
    %v691 = vadd.f32 %v689, 1.4214138
    %v692 = vadd.f32 %v690, 1.4214138
    %v693 = vmul.f32 %v691, %v682
    %v694 = vmul.f32 %v692, %v684
    %v695 = vadd.f32 %v693, -0.28449672
    %v696 = vadd.f32 %v694, -0.28449672
    %v697 = vmul.f32 %v695, %v682
    %v698 = vmul.f32 %v696, %v684
    %v699 = vadd.f32 %v697, 0.2548296
    %v700 = vadd.f32 %v698, 0.2548296
    %v701 = vmul.f32 %v699, %v682
    %v702 = vmul.f32 %v700, %v684
    %v703 = vsub.f32 0.0, %v675
    %v704 = vsub.f32 0.0, %v676
    %v705 = vmul.f32 %v703, %v675
    %v706 = vmul.f32 %v704, %v676
    %v707 = vmul.f32 %v705, 1.442695
    %v708 = vpow.pop %v707
    %v709 = vmul.f32 %v706, 1.442695
    %v710 = vpow.pop %v709
    %v711 = vmul.f32 %v701, %v708
    %v712 = vmul.f32 %v702, %v710
    %v713 = vsub.f32 1.0, %v711
    %v714 = vsub.f32 1.0, %v712
    %v715 = vmul.f32 %v673, %v713
    %v716 = vmul.f32 %v674, %v714
    %v717 = vadd.f32 %v715, 1.0
    %v718 = vadd.f32 %v716, 1.0
    %v719 = vmul.f32 %v667, %v717
    %v720 = vmul.f32 %v668, %v718
    %721 = vst [vmem:[#allocation5] sm:$0xff] %v719
    %722 = vst [vmem:[#allocation5 + $0x8] sm:$0xff] %v720
    // Predicated region
    $region30: #{tpu_custom_call.1} parent=1 // pred_check
      _
    $region31: #{tpu_custom_call.1} parent=1 // pred_check_branch
      %724 = sbr.rel (0) target = $region33
    $region32: #{tpu_custom_call.1} parent=1 // pred_region
      %s726 = ssub.s32 256, 256
      %727 = vsyncadd [#allocation4], %s726
      %s728 = sshll.u32 [#allocation5], 4
      %s729 = int_to_ptr.vmem [resolvable:$true] %s728
      %734 = dma.vmem_to_hbm [thread:$0]  %s729, 256, %s6, [#allocation4], 128, 128, 8
    $region33: #{tpu_custom_call.1} parent=1 // pred_fallthru
      _
    // Predicated region
    $region34: #{tpu_custom_call.1} parent=1 // pred_check
      _
    $region35: #{tpu_custom_call.1} parent=1 // pred_check_branch
      %736 = sbr.rel (0) target = $region37
    $region36: #{tpu_custom_call.1} parent=1 // pred_region
      %737 = dma.done [#allocation4], 256
    $region37: #{tpu_custom_call.1} parent=1 // pred_fallthru
      _
    %738 = vsyncpa [#allocation3], 1
    %739 = vsyncpa [#allocation4], 1

</llo_original>
